<compile_context>
chip_gen: v7x
topology: tpu7x:2x2x1
jax: 0.10.0
libtpu: 0.0.40
codegen_flags: <defaults>
</compile_context>

<pallas_src>
import functools

import jax
import jax.numpy as jnp
import numpy as np
from jax.experimental import pallas as pl
from jax.experimental.pallas import tpu as pltpu


def _round_up(x, m):
    return (x + m - 1) // m * m


# ----------------------------------------------------------------------------
# Kernel 1: LayerNorm over channels + fused v/q/k 1x1-conv projection (bf16 out).
# ----------------------------------------------------------------------------
def ln_qkv_kernel(x_ref, g_ref, b_ref, w_ref, qkv_ref, *, eps):
    x = x_ref[0].astype(jnp.float32)                      # (TH, C)
    c = x.shape[-1]
    # one-pass LN statistics; clamp variance against cancellation
    s1 = jnp.sum(x, axis=-1, keepdims=True)
    s2 = jnp.sum(x * x, axis=-1, keepdims=True)
    mean = s1 / c
    var = jnp.maximum(s2 / c - mean * mean, 0.0)
    xn = (x - mean) * jax.lax.rsqrt(var + eps)
    xn = xn * g_ref[...] + b_ref[...]                     # (TH, C) * (1, C)
    # single fused projection matmul, bf16 operands -> f32 accumulate -> bf16 store
    y = jnp.dot(xn.astype(jnp.bfloat16), w_ref[...],
                preferred_element_type=jnp.float32)
    qkv_ref[0] = y.astype(jnp.bfloat16)


def _pick_row_tile(hw, batch, c_in, c_out_pad, budget_bytes=28 * 1024 * 1024):
    """Largest multiple-of-8 divisor of hw within a padded, double-buffered budget."""
    per_row = (_round_up(c_in, 128) * 4 + _round_up(c_out_pad, 128) * 2) * 2
    max_rows = min(max(8, budget_bytes // per_row), 4096)
    if batch == 1 and hw >= 16:
        max_rows = min(max_rows, hw // 2)                 # >=2 grid steps (v7x megacore)
    limit = min(max_rows, hw)
    cand = limit - (limit % 8)
    while cand >= 8:
        if hw % cand == 0:
            return cand
        cand -= 8
    return hw                                             # fallback: whole axis


def ln_qkv(x_hw, gamma, beta, w_all, eps=1e-6):
    B, HW, C = x_hw.shape
    cpad = w_all.shape[1]
    th = _pick_row_tile(HW, B, C, cpad)
    kernel = functools.partial(ln_qkv_kernel, eps=eps)
    return pl.pallas_call(
        kernel,
        out_shape=jax.ShapeDtypeStruct((B, HW, cpad), jnp.bfloat16),
        grid=(B, HW // th),
        in_specs=[
            pl.BlockSpec((1, th, C), lambda b, h: (b, h, 0)),
            pl.BlockSpec((1, C), lambda b, h: (0, 0)),
            pl.BlockSpec((1, C), lambda b, h: (0, 0)),
            pl.BlockSpec((C, cpad), lambda b, h: (0, 0)),
        ],
        out_specs=pl.BlockSpec((1, th, cpad), lambda b, h: (b, h, 0)),
        compiler_params=pltpu.CompilerParams(
            dimension_semantics=("parallel", "parallel"),
            vmem_limit_bytes=48 * 1024 * 1024),           # safe on v5e/v6e/v7x
    )(x_hw, gamma, beta, w_all)


# ----------------------------------------------------------------------------
# Kernel 2: attention over the top-k pixels. (head, group) blocks are packed
# along the matmul rows with a block-diagonal softmax mask, so the tiny per-head
# matmuls become one MXU-sized matmul; output is a 128-lane dense f32 store.
# ----------------------------------------------------------------------------
def attn_kernel(qkv_ref, o_ref, *, dim, qk_dim, num_heads, t, gb, out_w):
    gbt = gb * t
    hq = qk_dim // num_heads
    hv = dim // num_heads

    qkv = qkv_ref[...]                                    # (gbt, cpad) bf16
    v2 = qkv[:, :out_w]                                   # v (+ extra channels sliced off later)
    q2 = qkv[:, dim:dim + qk_dim]                         # scale already folded into weights
    k2 = qkv[:, dim + qk_dim:dim + 2 * qk_dim]

    # Pack heads along rows: row order (head, group, pixel). Only q needs the
    # per-head channel mask; cross-block scores are killed by the block-diag mask.
    chan_q = jax.lax.broadcasted_iota(jnp.int32, (1, qk_dim), 1)
    q_parts = [q2 * ((chan_q // hq) == h).astype(q2.dtype) for h in range(num_heads)]
    q_p = jnp.concatenate(q_parts, axis=0)                # (R, qk_dim)
    k_p = jnp.concatenate([k2] * num_heads, axis=0)       # (R, qk_dim)
    v_p = jnp.concatenate([v2] * num_heads, axis=0)       # (R, out_w)
    R = num_heads * gbt

    # packed scores, f32 accumulation
    s = jax.lax.dot_general(q_p, k_p, (((1,), (1,)), ((), ())),
                            preferred_element_type=jnp.float32)   # (R, R)

    # block-diagonal mask: only pixels of the same (head, group) block attend
    blk_r = jax.lax.broadcasted_iota(jnp.int32, (R, R), 0) // t
    blk_c = jax.lax.broadcasted_iota(jnp.int32, (R, R), 1) // t
    s = jnp.where(blk_r == blk_c, s, -1e30)

    s = s - jnp.max(s, axis=-1, keepdims=True)            # softmax in f32
    p = jnp.exp(s)
    p = p * pl.reciprocal(jnp.sum(p, axis=-1, keepdims=True), approx=True)

    o = jnp.dot(p.astype(v_p.dtype), v_p,
                preferred_element_type=jnp.float32)        # (R, out_w)

    # select, per output channel c (head h = c // hv), the rows of head block h
    chan_o = jax.lax.broadcasted_iota(jnp.int32, (1, out_w), 1)
    acc = None
    for h in range(num_heads):
        m = jnp.logical_and(chan_o // hv == h, chan_o < dim).astype(jnp.float32)
        part = o[h * gbt:(h + 1) * gbt, :] * m
        acc = part if acc is None else acc + part
    o_ref[...] = acc                                       # (gbt, out_w) dense store


def _default_pack_rows():
    # v5e MXU is 128 wide; v6e/v7x are 256 wide.
    try:
        kind = jax.devices()[0].device_kind.lower()
        if "v5 lite" in kind or "v5e" in kind or "v5lite" in kind:
            return 128
    except Exception:
        pass
    return 256


def _pick_group_block(G, T, num_heads, pack_rows):
    """Groups per grid step so packed rows gb*num_heads*T ~ MXU tile, gb | G."""
    max_gb = max(1, pack_rows // max(1, num_heads * T))
    if G >= 2:
        max_gb = min(max_gb, G // 2)                      # >=2 grid steps (megacore)
    best = 1
    for cand in range(1, min(G, max_gb) + 1):
        if G % cand == 0 and (cand * T) % 8 == 0:
            best = cand
    if (best * T) % 8 != 0:                               # fall back to a single full block
        best = G
    return best


def sp_attention(qkv_flat, G, T, dim, qk_dim, num_heads):
    GT, cpad = qkv_flat.shape
    out_w = _round_up(dim, 128)
    gb = _pick_group_block(G, T, num_heads, _default_pack_rows())
    kernel = functools.partial(attn_kernel, dim=dim, qk_dim=qk_dim,
                               num_heads=num_heads, t=T, gb=gb, out_w=out_w)
    return pl.pallas_call(
        kernel,
        out_shape=jax.ShapeDtypeStruct((G * T, out_w), jnp.float32),
        grid=(G // gb,),
        in_specs=[pl.BlockSpec((gb * T, cpad), lambda i: (i, 0))],
        out_specs=pl.BlockSpec((gb * T, out_w), lambda i: (i, 0)),
        compiler_params=pltpu.CompilerParams(
            dimension_semantics=("parallel",),
            vmem_limit_bytes=32 * 1024 * 1024),
    )(qkv_flat)


# ----------------------------------------------------------------------------
# Full forward pass (glue in plain JAX: top-k, gather, scatter_mean).
# ----------------------------------------------------------------------------
def sp_intra_att_forward(x, affinity_matrix, num_spixels, params,
                         num_heads, topk, qk_scale=None):
    # x: (B, C, H, W) NCHW, affinity_matrix: (B, num_spixels, H*W)
    B, C, H, W = x.shape
    HW = H * W
    dim = C
    wq, wk, wv = params["wq"], params["wk"], params["wv"]   # (out, in) conv1x1
    gamma, beta = params["ln_gamma"], params["ln_beta"]
    qk_dim = wq.shape[0]
    head_dim = qk_dim // num_heads
    scale = qk_scale if qk_scale is not None else head_dim ** -0.5

    x_hw = x.reshape(B, C, HW).transpose(0, 2, 1)            # (B, HW, C)

    # Fused projection weight: channel order [v | q*scale | k | zero-pad] so the
    # store is lane-dense and the attention kernel's wide output covers v first.
    c_total = dim + 2 * qk_dim
    cpad = _round_up(c_total, 128)
    w_all = jnp.concatenate([wv.T, (wq * scale).T, wk.T], axis=1)
    w_all = jnp.pad(w_all, ((0, 0), (0, cpad - c_total))).astype(jnp.bfloat16)

    qkv = ln_qkv(x_hw, gamma.reshape(1, C), beta.reshape(1, C), w_all)  # (B,HW,cpad) bf16

    # TODO(synk): top-k / gather / scatter_mean are data-dependent; kept as XLA
    # glue (the gather could be fused into the attention kernel via scalar
    # prefetch + DMA gather as a further optimization). attn_drop(p=0) is identity.
    _, indices = jax.lax.top_k(affinity_matrix, topk)        # (B, Kn, T)
    Kn, T = num_spixels, topk
    idx_flat = indices.reshape(B, Kn * T)

    # single gathered bf16 stream into the attention kernel
    qkv_g = jax.vmap(lambda a, i: a[i])(qkv, idx_flat)       # (B, Kn*T, cpad) bf16
    G = B * Kn
    qkv_flat = qkv_g.reshape(G * T, cpad)

    out2d = sp_attention(qkv_flat, G, T, dim, qk_dim, num_heads)  # (G*T, out_w) f32
    # channel index is already (h * hv + c), matching 'b k h t c -> b (h c) (k t)'
    out_flat = (out2d[:, :dim].reshape(B, Kn, T, dim)
                .transpose(0, 3, 1, 2).reshape(B, dim, Kn * T))

    v_t = qkv[..., :dim].astype(jnp.float32).transpose(0, 2, 1)   # (B, dim, HW)

    # Matches the module's scatter_mean: destination values included in the sum
    # and counts seeded at 1. Counts computed once per pixel (same for channels).
    def scatter_mean_b(tgt_b, idx_b, src_b):
        summed = tgt_b.at[:, idx_b].add(src_b)
        cnt = jnp.ones((tgt_b.shape[1],), tgt_b.dtype).at[idx_b].add(1.0)
        return summed / cnt[None, :]

    out = jax.vmap(scatter_mean_b)(v_t, idx_flat, out_flat)  # (B, dim, HW)
    return out.reshape(B, dim, H, W)


# ----------------------------------------------------------------------------
# Pure-JAX reference (f32, no Pallas) for a correctness check.
# ----------------------------------------------------------------------------
def reference_forward(x, affinity_matrix, num_spixels, params,
                      num_heads, topk, qk_scale=None):
    B, C, H, W = x.shape
    HW = H * W
    dim = C
    wq, wk, wv = params["wq"], params["wk"], params["wv"]
    gamma, beta = params["ln_gamma"], params["ln_beta"]
    qk_dim = wq.shape[0]
    head_dim = qk_dim // num_heads
    scale = qk_scale if qk_scale is not None else head_dim ** -0.5

    x_hw = x.reshape(B, C, HW).transpose(0, 2, 1)
    mean = x_hw.mean(-1, keepdims=True)
    var = ((x_hw - mean) ** 2).mean(-1, keepdims=True)
    xn = (x_hw - mean) / jnp.sqrt(var + 1e-6) * gamma + beta
    q = xn @ wq.T
    k = xn @ wk.T
    v = xn @ wv.T

    _, indices = jax.lax.top_k(affinity_matrix, topk)
    Kn, T = num_spixels, topk
    idx_flat = indices.reshape(B, Kn * T)
    gather_b = lambda a, i: a[i]
    q_g = jax.vmap(gather_b)(q, idx_flat)
    k_g = jax.vmap(gather_b)(k, idx_flat)
    v_g = jax.vmap(gather_b)(v, idx_flat)

    def to_heads(t, ch):
        hd = ch // num_heads
        return t.reshape(B, Kn, T, num_heads, hd).transpose(0, 1, 3, 2, 4)

    q_h, k_h, v_h = to_heads(q_g, qk_dim), to_heads(k_g, qk_dim), to_heads(v_g, dim)
    attn = jnp.einsum('bkhtc,bkhsc->bkhts', q_h, k_h) * scale
    attn = jax.nn.softmax(attn, axis=-1)
    out = jnp.einsum('bkhts,bkhsc->bkhtc', attn, v_h)
    out_flat = out.transpose(0, 2, 4, 1, 3).reshape(B, dim, Kn * T)

    v_t = v.transpose(0, 2, 1)

    def scatter_mean_b(tgt_b, idx_b, src_b):
        new_src = tgt_b.at[:, idx_b].add(src_b)
        new_cnt = jnp.ones_like(tgt_b).at[:, idx_b].add(jnp.ones_like(src_b))
        return new_src / new_cnt

    out = jax.vmap(scatter_mean_b)(v_t, idx_flat, out_flat)
    return out.reshape(B, dim, H, W)


if __name__ == "__main__":
    # Small shapes consistent with the module.
    B, dim, H, W = 2, 32, 16, 16
    qk_dim, num_heads, num_spixels, topk = 16, 4, 8, 8

    key = jax.random.PRNGKey(0)
    kx, ka, kq, kk, kv, kg, kb = jax.random.split(key, 7)

    x = jax.random.normal(kx, (B, dim, H, W), dtype=jnp.float32)
    affinity = jax.random.normal(ka, (B, num_spixels, H * W), dtype=jnp.float32)

    params = {
        "wq": 0.1 * jax.random.normal(kq, (qk_dim, dim), dtype=jnp.float32),
        "wk": 0.1 * jax.random.normal(kk, (qk_dim, dim), dtype=jnp.float32),
        "wv": 0.1 * jax.random.normal(kv, (dim, dim), dtype=jnp.float32),
        "ln_gamma": 1.0 + 0.1 * jax.random.normal(kg, (dim,), dtype=jnp.float32),
        "ln_beta": 0.1 * jax.random.normal(kb, (dim,), dtype=jnp.float32),
    }

    out = sp_intra_att_forward(x, affinity, num_spixels, params,
                               num_heads=num_heads, topk=topk)
    out = jax.block_until_ready(out)

    ref = jax.block_until_ready(
        reference_forward(x, affinity, num_spixels, params,
                          num_heads=num_heads, topk=topk))

    assert out.shape == (B, dim, H, W)
    # bf16 matmul operands / bf16 qkv + approx reciprocal -> loosened tolerance
    np.testing.assert_allclose(np.asarray(out), np.asarray(ref),
                               rtol=3e-2, atol=3e-2)
    print("KERNEL_OK")
</pallas_src>

<mosaic_0001>
module attributes {stable_mosaic.version = 11 : i64} {
  func.func @ln_qkv_kernel(%arg0: i32, %arg1: i32, %arg2: memref<1x256x32xf32, #tpu.memory_space<vmem>>, %arg3: memref<1x32xf32, #tpu.memory_space<vmem>>, %arg4: memref<1x32xf32, #tpu.memory_space<vmem>>, %arg5: memref<32x128xbf16, #tpu.memory_space<vmem>>, %arg6: memref<1x256x128xbf16, #tpu.memory_space<vmem>>) attributes {dimension_semantics = [#tpu.dimension_semantics<parallel>, #tpu.dimension_semantics<parallel>], iteration_bounds = array<i64: 2, 1>, scalar_prefetch = 0 : i64, scratch_operands = 0 : i64, tpu.core_type = #tpu.core_type<tc>, window_params = [{transform_indices = @transform_0, window_bounds = array<i64: 1, 256, 32>}, {pipeline_mode = #tpu.pipeline_mode<synchronous>, transform_indices = @transform_1, window_bounds = array<i64: 1, 32>}, {pipeline_mode = #tpu.pipeline_mode<synchronous>, transform_indices = @transform_2, window_bounds = array<i64: 1, 32>}, {pipeline_mode = #tpu.pipeline_mode<synchronous>, transform_indices = @transform_3, window_bounds = array<i64: 32, 128>}, {transform_indices = @transform_4, window_bounds = array<i64: 1, 256, 128>}]} {
    %c0 = arith.constant 0 : index
    %c0_0 = arith.constant 0 : index
    %c0_1 = arith.constant 0 : index
    %0 = vector.load %arg2[%c0, %c0_0, %c0_1] : memref<1x256x32xf32, #tpu.memory_space<vmem>>, vector<1x256x32xf32>
    %1 = vector.shape_cast %0 : vector<1x256x32xf32> to vector<256x32xf32>
    %cst = arith.constant dense<0.000000e+00> : vector<256xf32>
    %2 = vector.multi_reduction <add>, %1, %cst [1] : vector<256x32xf32> to vector<256xf32>
    %3 = vector.shape_cast %2 : vector<256xf32> to vector<256x1xf32>
    %4 = arith.mulf %1, %1 : vector<256x32xf32>
    %cst_2 = arith.constant dense<0.000000e+00> : vector<256xf32>
    %5 = vector.multi_reduction <add>, %4, %cst_2 [1] : vector<256x32xf32> to vector<256xf32>
    %6 = vector.shape_cast %5 : vector<256xf32> to vector<256x1xf32>
    %cst_3 = arith.constant 3.200000e+01 : f32
    %7 = vector.broadcast %cst_3 : f32 to vector<256x1xf32>
    %8 = arith.divf %3, %7 : vector<256x1xf32>
    %cst_4 = arith.constant 3.200000e+01 : f32
    %9 = vector.broadcast %cst_4 : f32 to vector<256x1xf32>
    %10 = arith.divf %6, %9 : vector<256x1xf32>
    %11 = arith.mulf %8, %8 : vector<256x1xf32>
    %12 = arith.subf %10, %11 : vector<256x1xf32>
    %cst_5 = arith.constant 0.000000e+00 : f32
    %13 = vector.broadcast %cst_5 : f32 to vector<256x1xf32>
    %14 = arith.maximumf %12, %13 : vector<256x1xf32>
    %15 = vector.broadcast %8 : vector<256x1xf32> to vector<256x32xf32>
    %16 = arith.subf %1, %15 : vector<256x32xf32>
    %cst_6 = arith.constant 9.99999997E-7 : f32
    %17 = vector.broadcast %cst_6 : f32 to vector<256x1xf32>
    %18 = arith.addf %14, %17 : vector<256x1xf32>
    %19 = math.rsqrt %18 : vector<256x1xf32>
    %20 = vector.broadcast %19 : vector<256x1xf32> to vector<256x32xf32>
    %21 = arith.mulf %16, %20 : vector<256x32xf32>
    %c0_7 = arith.constant 0 : index
    %c0_8 = arith.constant 0 : index
    %22 = vector.load %arg3[%c0_7, %c0_8] : memref<1x32xf32, #tpu.memory_space<vmem>>, vector<1x32xf32>
    %23 = vector.broadcast %22 : vector<1x32xf32> to vector<256x32xf32>
    %24 = arith.mulf %21, %23 : vector<256x32xf32>
    %c0_9 = arith.constant 0 : index
    %c0_10 = arith.constant 0 : index
    %25 = vector.load %arg4[%c0_9, %c0_10] : memref<1x32xf32, #tpu.memory_space<vmem>>, vector<1x32xf32>
    %26 = vector.broadcast %25 : vector<1x32xf32> to vector<256x32xf32>
    %27 = arith.addf %24, %26 : vector<256x32xf32>
    %28 = arith.truncf %27 : vector<256x32xf32> to vector<256x32xbf16>
    %c0_11 = arith.constant 0 : index
    %c0_12 = arith.constant 0 : index
    %29 = vector.load %arg5[%c0_11, %c0_12] : memref<32x128xbf16, #tpu.memory_space<vmem>>, vector<32x128xbf16>
    %cst_13 = arith.constant dense<0.000000e+00> : vector<256x128xf32>
    %30 = tpu.matmul %28, %29, %cst_13 {dimension_numbers = #tpu.dot_dimension_numbers<[1], [0], [0], [1], [0, 0, 1, 1], [], []>} : vector<256x32xbf16>, vector<32x128xbf16>, vector<256x128xf32> -> vector<256x128xf32>
    %31 = arith.truncf %30 : vector<256x128xf32> to vector<256x128xbf16>
    %c0_14 = arith.constant 0 : index
    %c0_15 = arith.constant 0 : index
    %c0_16 = arith.constant 0 : index
    %32 = vector.load %arg6[%c0_14, %c0_15, %c0_16] : memref<1x256x128xbf16, #tpu.memory_space<vmem>>, vector<1x256x128xbf16>
    %33 = vector.shape_cast %32 : vector<1x256x128xbf16> to vector<256x128xbf16>
    %34 = vector.shape_cast %31 : vector<256x128xbf16> to vector<1x256x128xbf16>
    tpu.vector_store %arg6[%c0_14, %c0_15, %c0_16], %34 {strides = array<i32>} : memref<1x256x128xbf16, #tpu.memory_space<vmem>>, vector<1x256x128xbf16>,
    return
  }
  func.func @transform_0(%arg0: i32, %arg1: i32) -> (i32, i32, i32) {
    %c0_i32 = arith.constant 0 : i32
    %c0_i32_0 = arith.constant 0 : i32
    return %arg0, %arg1, %c0_i32 : i32, i32, i32
  }
  func.func @transform_1(%arg0: i32, %arg1: i32) -> (i32, i32) {
    %c0_i32 = arith.constant 0 : i32
    %c0_i32_0 = arith.constant 0 : i32
    %c0_i32_1 = arith.constant 0 : i32
    return %c0_i32, %c0_i32_0 : i32, i32
  }
  func.func @transform_2(%arg0: i32, %arg1: i32) -> (i32, i32) {
    %c0_i32 = arith.constant 0 : i32
    %c0_i32_0 = arith.constant 0 : i32
    %c0_i32_1 = arith.constant 0 : i32
    return %c0_i32, %c0_i32_0 : i32, i32
  }
  func.func @transform_3(%arg0: i32, %arg1: i32) -> (i32, i32) {
    %c0_i32 = arith.constant 0 : i32
    %c0_i32_0 = arith.constant 0 : i32
    %c0_i32_1 = arith.constant 0 : i32
    return %c0_i32, %c0_i32_0 : i32, i32
  }
  func.func @transform_4(%arg0: i32, %arg1: i32) -> (i32, i32, i32) {
    %c0_i32 = arith.constant 0 : i32
    %c0_i32_0 = arith.constant 0 : i32
    return %arg0, %arg1, %c0_i32 : i32, i32, i32
  }
}

</mosaic_0001>

<llo_original>
// kernel: tpu_custom_call.1
$region0: #{tpu_custom_call.1}
  #allocation0 [shape = 'u32[]', space=smem, size = 0x4, offset = 0x4, fixed_abs, tag = 'smem constant byte address 0x4 - core index']
  #allocation1 [shape = 'u32[144,128]{1,0:T(1,128)}', space=vmem, size = 0x12000, scoped, tag = 'internal scratch']
  %s0 = inlined_call_operand.vmem [shape: f32[2,256,32], index: 0, kind: input, shape index: {}]
  %s1 = inlined_call_operand.vmem [shape: f32[1,32], index: 1, kind: input, shape index: {}]
  %s2 = inlined_call_operand.vmem [shape: f32[1,32], index: 2, kind: input, shape index: {}]
  %s3 = inlined_call_operand.vmem [shape: bf16[32,128], index: 3, kind: input, shape index: {}]
  %s4 = inlined_call_operand.hbm [shape: bf16[2,256,128], index: 4, kind: output, shape index: {}]
  %s5 = sld [smem:[#allocation0]]
  $region49: #{tpu_custom_call.1} parent=0
    _
  %s7 = ssub.s32 1, %s5
  %s8 = scalar_select 0, %s7, %s5
  $region1: #{tpu_custom_call.1} parent=0
    #allocation2 [shape = 'u8[131072]{0}', space=vmem, size = 0x20000, scoped, tag = 'output window, operand 0']
    #allocation3 [shape = 's32[2]{0}', space=sflag, size = 0x8, scoped, tag = 'scoped memory for tpu_custom_call.1']
    %9 = vsyncpa [#allocation3], 0
    %s10 = scalar_lea.sflag [#allocation3], 1
    %11 = vsyncpa %s10, 0
    loop: start=0, step=1, limit=4
    $region2: #{tpu_custom_call.1} parent=1 // loop_pre_header
      _
    $region3: #{tpu_custom_call.1} parent=1 // loop_header
      %s13 = sphi 0, %s17
      %p14 = scmp.ge.s32.totalorder %s13, 4
      %s20 = sphi 0, %s32
      %s21 = sphi 0, %s28
      %s22 = sphi 0, %s20
      %s23 = sphi 0, %s21
      %s24 = sphi 0, %s22
      %s25 = sphi 0, %s23
      %s37 = sphi 0, %s39
      %s40 = sphi 0, %s37
      %s41 = sphi 0, %s40
      %s57 = sphi 0, %s41
      %s61 = sphi 0, %s61
      %s63 = sphi 0, %s61
      %s64 = sphi 0, %s63
      %s78 = sphi 0, %s64
      %s82 = sphi 0, %s82
      %s84 = sphi 0, %s82
      %s85 = sphi 0, %s84
      %s99 = sphi 0, %s85
      %s103 = sphi 0, %s103
      %s105 = sphi 0, %s103
      %s106 = sphi 0, %s105
      %s120 = sphi 0, %s106
      %s128 = sphi 0, %s130
      %s131 = sphi 0, %s128
      %s132 = sphi 0, %s131
      %s148 = sphi 0, %s132
    $region4: #{tpu_custom_call.1} parent=1 // loop_header_branch
      %16 = sbr.rel (%p14) target = $region8
    $region5: #{tpu_custom_call.1} parent=1 // loop_body
      %s18 = ssub.s32 %s13, 1
      %s19 = ssub.s32 %s13, 2
      %s26 = sadd.s32 1, %s21
      %p27 = scmp.ge.s32.totalorder %s26, 1
      %s28 = scalar_select %p27, 0, %s26
      %s29 = sadd.s32 1, %s20
      %s30 = scalar_select %p27, %s29, %s20
      %p31 = scmp.ge.s32.totalorder %s30, 2
      %s32 = scalar_select %p31, 0, %s30
      %s33 = ssub.s32 %s20, %s32
      %s34 = ssub.s32 %s21, %s28
      %s35 = sor.u32 %s33, %s34
      %p36 = scmp.eq.s32.totalorder %s35, 0
      %s38 = sadd.s32 %s37, 1
      %s39 = scalar_select %p36, %s37, %s38
      %p42 = pneg %p36
      %p43 = scmp.eq.s32.totalorder %s13, 1
      %p44 = por %p42, %p43
      %p45 = scmp.ne.s32.totalorder %s37, %s40
      %p46 = scmp.eq.s32.totalorder %s13, 0
      %p47 = por %p45, %p46
      %p48 = scmp.ne.s32.totalorder %s37, %s40
      %p49 = scmp.eq.s32.totalorder %s18, 1
      %p50 = por %p48, %p49
      %p51 = scmp.ne.s32.totalorder %s40, %s41
      %p52 = scmp.eq.s32.totalorder %s18, 0
      %p53 = por %p51, %p52
      %p54 = scmp.ne.s32.totalorder %s40, %s41
      %p55 = scmp.eq.s32.totalorder %s19, 1
      %p56 = por %p54, %p55
      %p58 = scmp.ne.s32.totalorder %s41, %s57
      %p59 = scmp.eq.s32.totalorder %s19, 0
      %p60 = por %p58, %p59
      %s62 = sadd.s32 %s61, 1
      %p65 = scmp.eq.s32.totalorder %s13, 1
      %p66 = scmp.ne.s32.totalorder %s61, %s63
      %p67 = scmp.eq.s32.totalorder %s13, 0
      %p68 = por %p66, %p67
      %p69 = scmp.ne.s32.totalorder %s61, %s63
      %p70 = scmp.eq.s32.totalorder %s18, 1
      %p71 = por %p69, %p70
      %p72 = scmp.ne.s32.totalorder %s63, %s64
      %p73 = scmp.eq.s32.totalorder %s18, 0
      %p74 = por %p72, %p73
      %p75 = scmp.ne.s32.totalorder %s63, %s64
      %p76 = scmp.eq.s32.totalorder %s19, 1
      %p77 = por %p75, %p76
      %p79 = scmp.ne.s32.totalorder %s64, %s78
      %p80 = scmp.eq.s32.totalorder %s19, 0
      %p81 = por %p79, %p80
      %s83 = sadd.s32 %s82, 1
      %p86 = scmp.eq.s32.totalorder %s13, 1
      %p87 = scmp.ne.s32.totalorder %s82, %s84
      %p88 = scmp.eq.s32.totalorder %s13, 0
      %p89 = por %p87, %p88
      %p90 = scmp.ne.s32.totalorder %s82, %s84
      %p91 = scmp.eq.s32.totalorder %s18, 1
      %p92 = por %p90, %p91
      %p93 = scmp.ne.s32.totalorder %s84, %s85
      %p94 = scmp.eq.s32.totalorder %s18, 0
      %p95 = por %p93, %p94
      %p96 = scmp.ne.s32.totalorder %s84, %s85
      %p97 = scmp.eq.s32.totalorder %s19, 1
      %p98 = por %p96, %p97
      %p100 = scmp.ne.s32.totalorder %s85, %s99
      %p101 = scmp.eq.s32.totalorder %s19, 0
      %p102 = por %p100, %p101
      %s104 = sadd.s32 %s103, 1
      %p107 = scmp.eq.s32.totalorder %s13, 1
      %p108 = scmp.ne.s32.totalorder %s103, %s105
      %p109 = scmp.eq.s32.totalorder %s13, 0
      %p110 = por %p108, %p109
      %p111 = scmp.ne.s32.totalorder %s103, %s105
      %p112 = scmp.eq.s32.totalorder %s18, 1
      %p113 = por %p111, %p112
      %p114 = scmp.ne.s32.totalorder %s105, %s106
      %p115 = scmp.eq.s32.totalorder %s18, 0
      %p116 = por %p114, %p115
      %p117 = scmp.ne.s32.totalorder %s105, %s106
      %p118 = scmp.eq.s32.totalorder %s19, 1
      %p119 = por %p117, %p118
      %p121 = scmp.ne.s32.totalorder %s106, %s120
      %p122 = scmp.eq.s32.totalorder %s19, 0
      %p123 = por %p121, %p122
      %s124 = ssub.s32 %s20, %s32
      %s125 = ssub.s32 %s21, %s28
      %s126 = sor.u32 %s124, %s125
      %p127 = scmp.eq.s32.totalorder %s126, 0
      %s129 = sadd.s32 %s128, 1
      %s130 = scalar_select %p127, %s128, %s129
      %p133 = pneg %p127
      %p134 = scmp.eq.s32.totalorder %s13, 1
      %p135 = por %p133, %p134
      %p136 = scmp.ne.s32.totalorder %s128, %s131
      %p137 = scmp.eq.s32.totalorder %s13, 0
      %p138 = por %p136, %p137
      %p139 = scmp.ne.s32.totalorder %s128, %s131
      %p140 = scmp.eq.s32.totalorder %s18, 1
      %p141 = por %p139, %p140
      %p142 = scmp.ne.s32.totalorder %s131, %s132
      %p143 = scmp.eq.s32.totalorder %s18, 0
      %p144 = por %p142, %p143
      %p145 = scmp.ne.s32.totalorder %s131, %s132
      %p146 = scmp.eq.s32.totalorder %s19, 1
      %p147 = por %p145, %p146
      %p149 = scmp.ne.s32.totalorder %s132, %s148
      %p150 = scmp.eq.s32.totalorder %s19, 0
      %p151 = por %p149, %p150
      %p152 = scmp.le.s32.totalorder 1, %s13
      %p153 = scmp.lt.s32.totalorder %s13, 3
      %p154 = pnand %p152, %p153
      %p155 = pneg %p154
      // Predicated region
      $region9: #{tpu_custom_call.1} parent=5 // pred_check
        _
      $region10: #{tpu_custom_call.1} parent=5 // pred_check_branch
        %157 = sbr.rel (%p154) target = $region12
      $region11: #{tpu_custom_call.1} parent=5 // pred_region
        %s158 = ssub.s32 %s13, 1
        // Predicated region
        $region13: #{tpu_custom_call.1} parent=11 // pred_check
          %p159 = pneg %p74
        $region14: #{tpu_custom_call.1} parent=11 // pred_check_branch
          %161 = sbr.rel (%p159) target = $region16
        $region15: #{tpu_custom_call.1} parent=11 // pred_region
          _
        $region16: #{tpu_custom_call.1} parent=11 // pred_fallthru
          _
        // Predicated region
        $region17: #{tpu_custom_call.1} parent=11 // pred_check
          %p162 = pneg %p95
        $region18: #{tpu_custom_call.1} parent=11 // pred_check_branch
          %164 = sbr.rel (%p162) target = $region20
        $region19: #{tpu_custom_call.1} parent=11 // pred_region
          _
        $region20: #{tpu_custom_call.1} parent=11 // pred_fallthru
          _
        // Predicated region
        $region21: #{tpu_custom_call.1} parent=11 // pred_check
          %p165 = pneg %p116
        $region22: #{tpu_custom_call.1} parent=11 // pred_check_branch
          %167 = sbr.rel (%p165) target = $region24
        $region23: #{tpu_custom_call.1} parent=11 // pred_region
          _
        $region24: #{tpu_custom_call.1} parent=11 // pred_fallthru
          _
      $region12: #{tpu_custom_call.1} parent=5 // pred_fallthru
        _
      %p168 = scmp.lt.s32.totalorder %s13, 2
      // Predicated region
      $region25: #{tpu_custom_call.1} parent=5 // pred_check
        %p169 = pneg %p168
      $region26: #{tpu_custom_call.1} parent=5 // pred_check_branch
        %171 = sbr.rel (%p169) target = $region28
      $region27: #{tpu_custom_call.1} parent=5 // pred_region
        // Predicated region
        $region29: #{tpu_custom_call.1} parent=27 // pred_check
          %p172 = pneg %p47
        $region30: #{tpu_custom_call.1} parent=27 // pred_check_branch
          %174 = sbr.rel (%p172) target = $region32
        $region31: #{tpu_custom_call.1} parent=27 // pred_region
          %s175 = smul.u32 32, %s21
          %p176 = scmp.lt.s32.totalorder %s20, 1
          %s177 = scalar_select %p176, %s20, 1
          %p178 = scmp.lt.s32.totalorder %s175, 31
          %s179 = scalar_select %p178, %s175, 31
          %s180 = smul.addr %s177, 32
          %s181 = sadd.s32 %s179, %s180
          %s182 = smul.addr %s181, 8
          %s183 = scalar_lea.vmem %s0, %s182
          %s184 = smul.u32 32, %s21
        $region32: #{tpu_custom_call.1} parent=27 // pred_fallthru
          _
      $region28: #{tpu_custom_call.1} parent=5 // pred_fallthru
        _
      %p185 = scmp.le.s32.totalorder 1, %s13
      %p186 = scmp.lt.s32.totalorder %s13, 3
      %p187 = pnand %p185, %p186
      %p188 = pneg %p187
      // Predicated region
      $region33: #{tpu_custom_call.1} parent=5 // pred_check
        _
      $region34: #{tpu_custom_call.1} parent=5 // pred_check_branch
        %190 = sbr.rel (%p187) target = $region36
      $region35: #{tpu_custom_call.1} parent=5 // pred_region
        %s191 = ssub.s32 %s13, 1
        %s192 = smul.u32 32, %s23
        %p193 = scmp.lt.s32.totalorder %s22, 1
        %s194 = scalar_select %p193, %s22, 1
        %p195 = scmp.lt.s32.totalorder %s192, 31
        %s196 = scalar_select %p195, %s192, 31
        %s197 = smul.addr %s194, 32
        %s198 = sadd.s32 %s196, %s197
        %s199 = smul.addr %s198, 8
        %s200 = scalar_lea.vmem %s0, %s199
        %p201 = pneg %p53
        %p202 = pneg %p50
        %p203 = pneg %p74
        %p204 = pneg %p71
        %p205 = pneg %p95
        %p206 = pneg %p92
        %p207 = pneg %p116
        %p208 = pneg %p113
        %p209 = pneg %p144
        %p210 = pneg %p141
        %s211 = sand.u32 %s131, 1
        %s212 = scalar_lea.sflag [#allocation3], %s211
        %s213 = sand.u32 %s131, 1
        %s214 = smul.addr %s213, 128
        %s215 = scalar_lea.vmem [#allocation2], %s214
        %s216 = smul.u32 32, %s23
        %p217 = scmp.lt.s32.totalorder %s22, 1
        %s218 = scalar_select %p217, %s22, 1
        %p219 = scmp.lt.s32.totalorder %s216, 31
        %s220 = scalar_select %p219, %s216, 31
        %s221 = smul.addr %s218, 32
        %s222 = sadd.s32 %s220, %s221
        %s223 = smul.addr %s222, 8
        %s224 = scalar_lea.vmem %s0, %s223
        %s225 = smul.u32 32, %s23
        %s226 = smul.u32 32, %s23
        %v228 = vld [vmem:[%s224] sm:$0xff]
        %v229 = vld [vmem:[%s224 + $0x8] sm:$0xff]
        %v230 = vld [vmem:[%s224 + $0x10] sm:$0xff]
        %v231 = vld [vmem:[%s224 + $0x18] sm:$0xff]
        %v232 = vld [vmem:[%s224 + $0x20] sm:$0xff]
        %v233 = vld [vmem:[%s224 + $0x28] sm:$0xff]
        %v234 = vld [vmem:[%s224 + $0x30] sm:$0xff]
        %v235 = vld [vmem:[%s224 + $0x38] sm:$0xff]
        %v236 = vld [vmem:[%s224 + $0x40] sm:$0xff]
        %v237 = vld [vmem:[%s224 + $0x48] sm:$0xff]
        %v238 = vld [vmem:[%s224 + $0x50] sm:$0xff]
        %v239 = vld [vmem:[%s224 + $0x58] sm:$0xff]
        %v240 = vld [vmem:[%s224 + $0x60] sm:$0xff]
        %v241 = vld [vmem:[%s224 + $0x68] sm:$0xff]
        %v242 = vld [vmem:[%s224 + $0x70] sm:$0xff]
        %v243 = vld [vmem:[%s224 + $0x78] sm:$0xff]
        %v244 = vld [vmem:[%s224 + $0x80] sm:$0xff]
        %v245 = vld [vmem:[%s224 + $0x88] sm:$0xff]
        %v246 = vld [vmem:[%s224 + $0x90] sm:$0xff]
        %v247 = vld [vmem:[%s224 + $0x98] sm:$0xff]
        %v248 = vld [vmem:[%s224 + $0xa0] sm:$0xff]
        %v249 = vld [vmem:[%s224 + $0xa8] sm:$0xff]
        %v250 = vld [vmem:[%s224 + $0xb0] sm:$0xff]
        %v251 = vld [vmem:[%s224 + $0xb8] sm:$0xff]
        %v252 = vld [vmem:[%s224 + $0xc0] sm:$0xff]
        %v253 = vld [vmem:[%s224 + $0xc8] sm:$0xff]
        %v254 = vld [vmem:[%s224 + $0xd0] sm:$0xff]
        %v255 = vld [vmem:[%s224 + $0xd8] sm:$0xff]
        %v256 = vld [vmem:[%s224 + $0xe0] sm:$0xff]
        %v257 = vld [vmem:[%s224 + $0xe8] sm:$0xff]
        %v258 = vld [vmem:[%s224 + $0xf0] sm:$0xff]
        %v259 = vld [vmem:[%s224 + $0xf8] sm:$0xff]
        %vm260 = vcmask 261120
        %v261 = vsel %vm260, %v228, 0.0
        %262 = vadd.xlane.f32.xlu0 %v261
        %v263 = vpop.xlane.xlu0 %262
        %v264 = vsel %vm260, %v229, 0.0
        %265 = vadd.xlane.f32.xlu0 %v264
        %v266 = vpop.xlane.xlu0 %265
        %v267 = vsel %vm260, %v230, 0.0
        %268 = vadd.xlane.f32.xlu0 %v267
        %v269 = vpop.xlane.xlu0 %268
        %v270 = vsel %vm260, %v231, 0.0
        %271 = vadd.xlane.f32.xlu0 %v270
        %v272 = vpop.xlane.xlu0 %271
        %v273 = vsel %vm260, %v232, 0.0
        %274 = vadd.xlane.f32.xlu0 %v273
        %v275 = vpop.xlane.xlu0 %274
        %v276 = vsel %vm260, %v233, 0.0
        %277 = vadd.xlane.f32.xlu0 %v276
        %v278 = vpop.xlane.xlu0 %277
        %v279 = vsel %vm260, %v234, 0.0
        %280 = vadd.xlane.f32.xlu0 %v279
        %v281 = vpop.xlane.xlu0 %280
        %v282 = vsel %vm260, %v235, 0.0
        %283 = vadd.xlane.f32.xlu0 %v282
        %v284 = vpop.xlane.xlu0 %283
        %v285 = vsel %vm260, %v236, 0.0
        %286 = vadd.xlane.f32.xlu0 %v285
        %v287 = vpop.xlane.xlu0 %286
        %v288 = vsel %vm260, %v237, 0.0
        %289 = vadd.xlane.f32.xlu0 %v288
        %v290 = vpop.xlane.xlu0 %289
        %v291 = vsel %vm260, %v238, 0.0
        %292 = vadd.xlane.f32.xlu0 %v291
        %v293 = vpop.xlane.xlu0 %292
        %v294 = vsel %vm260, %v239, 0.0
        %295 = vadd.xlane.f32.xlu0 %v294
        %v296 = vpop.xlane.xlu0 %295
        %v297 = vsel %vm260, %v240, 0.0
        %298 = vadd.xlane.f32.xlu0 %v297
        %v299 = vpop.xlane.xlu0 %298
        %v300 = vsel %vm260, %v241, 0.0
        %301 = vadd.xlane.f32.xlu0 %v300
        %v302 = vpop.xlane.xlu0 %301
        %v303 = vsel %vm260, %v242, 0.0
        %304 = vadd.xlane.f32.xlu0 %v303
        %v305 = vpop.xlane.xlu0 %304
        %v306 = vsel %vm260, %v243, 0.0
        %307 = vadd.xlane.f32.xlu0 %v306
        %v308 = vpop.xlane.xlu0 %307
        %v309 = vsel %vm260, %v244, 0.0
        %310 = vadd.xlane.f32.xlu0 %v309
        %v311 = vpop.xlane.xlu0 %310
        %v312 = vsel %vm260, %v245, 0.0
        %313 = vadd.xlane.f32.xlu0 %v312
        %v314 = vpop.xlane.xlu0 %313
        %v315 = vsel %vm260, %v246, 0.0
        %316 = vadd.xlane.f32.xlu0 %v315
        %v317 = vpop.xlane.xlu0 %316
        %v318 = vsel %vm260, %v247, 0.0
        %319 = vadd.xlane.f32.xlu0 %v318
        %v320 = vpop.xlane.xlu0 %319
        %v321 = vsel %vm260, %v248, 0.0
        %322 = vadd.xlane.f32.xlu0 %v321
        %v323 = vpop.xlane.xlu0 %322
        %v324 = vsel %vm260, %v249, 0.0
        %325 = vadd.xlane.f32.xlu0 %v324
        %v326 = vpop.xlane.xlu0 %325
        %v327 = vsel %vm260, %v250, 0.0
        %328 = vadd.xlane.f32.xlu0 %v327
        %v329 = vpop.xlane.xlu0 %328
        %v330 = vsel %vm260, %v251, 0.0
        %331 = vadd.xlane.f32.xlu0 %v330
        %v332 = vpop.xlane.xlu0 %331
        %v333 = vsel %vm260, %v252, 0.0
        %334 = vadd.xlane.f32.xlu0 %v333
        %v335 = vpop.xlane.xlu0 %334
        %v336 = vsel %vm260, %v253, 0.0
        %337 = vadd.xlane.f32.xlu0 %v336
        %v338 = vpop.xlane.xlu0 %337
        %v339 = vsel %vm260, %v254, 0.0
        %340 = vadd.xlane.f32.xlu0 %v339
        %v341 = vpop.xlane.xlu0 %340
        %v342 = vsel %vm260, %v255, 0.0
        %343 = vadd.xlane.f32.xlu0 %v342
        %v344 = vpop.xlane.xlu0 %343
        %v345 = vsel %vm260, %v256, 0.0
        %346 = vadd.xlane.f32.xlu0 %v345
        %v347 = vpop.xlane.xlu0 %346
        %v348 = vsel %vm260, %v257, 0.0
        %349 = vadd.xlane.f32.xlu0 %v348
        %v350 = vpop.xlane.xlu0 %349
        %v351 = vsel %vm260, %v258, 0.0
        %352 = vadd.xlane.f32.xlu0 %v351
        %v353 = vpop.xlane.xlu0 %352
        %v354 = vsel %vm260, %v259, 0.0
        %355 = vadd.xlane.f32.xlu0 %v354
        %v356 = vpop.xlane.xlu0 %355
        %v357 = vmul.f32 %v228, %v228
        %v358 = vmul.f32 %v229, %v229
        %v359 = vmul.f32 %v230, %v230
        %v360 = vmul.f32 %v231, %v231
        %v361 = vmul.f32 %v232, %v232
        %v362 = vmul.f32 %v233, %v233
        %v363 = vmul.f32 %v234, %v234
        %v364 = vmul.f32 %v235, %v235
        %v365 = vmul.f32 %v236, %v236
        %v366 = vmul.f32 %v237, %v237
        %v367 = vmul.f32 %v238, %v238
        %v368 = vmul.f32 %v239, %v239
        %v369 = vmul.f32 %v240, %v240
        %v370 = vmul.f32 %v241, %v241
        %v371 = vmul.f32 %v242, %v242
        %v372 = vmul.f32 %v243, %v243
        %v373 = vmul.f32 %v244, %v244
        %v374 = vmul.f32 %v245, %v245
        %v375 = vmul.f32 %v246, %v246
        %v376 = vmul.f32 %v247, %v247
        %v377 = vmul.f32 %v248, %v248
        %v378 = vmul.f32 %v249, %v249
        %v379 = vmul.f32 %v250, %v250
        %v380 = vmul.f32 %v251, %v251
        %v381 = vmul.f32 %v252, %v252
        %v382 = vmul.f32 %v253, %v253
        %v383 = vmul.f32 %v254, %v254
        %v384 = vmul.f32 %v255, %v255
        %v385 = vmul.f32 %v256, %v256
        %v386 = vmul.f32 %v257, %v257
        %v387 = vmul.f32 %v258, %v258
        %v388 = vmul.f32 %v259, %v259
        %v389 = vsel %vm260, %v357, 0.0
        %390 = vadd.xlane.f32.xlu0 %v389
        %v391 = vpop.xlane.xlu0 %390
        %v392 = vsel %vm260, %v358, 0.0
        %393 = vadd.xlane.f32.xlu0 %v392
        %v394 = vpop.xlane.xlu0 %393
        %v395 = vsel %vm260, %v359, 0.0
        %396 = vadd.xlane.f32.xlu0 %v395
        %v397 = vpop.xlane.xlu0 %396
        %v398 = vsel %vm260, %v360, 0.0
        %399 = vadd.xlane.f32.xlu0 %v398
        %v400 = vpop.xlane.xlu0 %399
        %v401 = vsel %vm260, %v361, 0.0
        %402 = vadd.xlane.f32.xlu0 %v401
        %v403 = vpop.xlane.xlu0 %402
        %v404 = vsel %vm260, %v362, 0.0
        %405 = vadd.xlane.f32.xlu0 %v404
        %v406 = vpop.xlane.xlu0 %405
        %v407 = vsel %vm260, %v363, 0.0
        %408 = vadd.xlane.f32.xlu0 %v407
        %v409 = vpop.xlane.xlu0 %408
        %v410 = vsel %vm260, %v364, 0.0
        %411 = vadd.xlane.f32.xlu0 %v410
        %v412 = vpop.xlane.xlu0 %411
        %v413 = vsel %vm260, %v365, 0.0
        %414 = vadd.xlane.f32.xlu0 %v413
        %v415 = vpop.xlane.xlu0 %414
        %v416 = vsel %vm260, %v366, 0.0
        %417 = vadd.xlane.f32.xlu0 %v416
        %v418 = vpop.xlane.xlu0 %417
        %v419 = vsel %vm260, %v367, 0.0
        %420 = vadd.xlane.f32.xlu0 %v419
        %v421 = vpop.xlane.xlu0 %420
        %v422 = vsel %vm260, %v368, 0.0
        %423 = vadd.xlane.f32.xlu0 %v422
        %v424 = vpop.xlane.xlu0 %423
        %v425 = vsel %vm260, %v369, 0.0
        %426 = vadd.xlane.f32.xlu0 %v425
        %v427 = vpop.xlane.xlu0 %426
        %v428 = vsel %vm260, %v370, 0.0
        %429 = vadd.xlane.f32.xlu0 %v428
        %v430 = vpop.xlane.xlu0 %429
        %v431 = vsel %vm260, %v371, 0.0
        %432 = vadd.xlane.f32.xlu0 %v431
        %v433 = vpop.xlane.xlu0 %432
        %v434 = vsel %vm260, %v372, 0.0
        %435 = vadd.xlane.f32.xlu0 %v434
        %v436 = vpop.xlane.xlu0 %435
        %v437 = vsel %vm260, %v373, 0.0
        %438 = vadd.xlane.f32.xlu0 %v437
        %v439 = vpop.xlane.xlu0 %438
        %v440 = vsel %vm260, %v374, 0.0
        %441 = vadd.xlane.f32.xlu0 %v440
        %v442 = vpop.xlane.xlu0 %441
        %v443 = vsel %vm260, %v375, 0.0
        %444 = vadd.xlane.f32.xlu0 %v443
        %v445 = vpop.xlane.xlu0 %444
        %v446 = vsel %vm260, %v376, 0.0
        %447 = vadd.xlane.f32.xlu0 %v446
        %v448 = vpop.xlane.xlu0 %447
        %v449 = vsel %vm260, %v377, 0.0
        %450 = vadd.xlane.f32.xlu0 %v449
        %v451 = vpop.xlane.xlu0 %450
        %v452 = vsel %vm260, %v378, 0.0
        %453 = vadd.xlane.f32.xlu0 %v452
        %v454 = vpop.xlane.xlu0 %453
        %v455 = vsel %vm260, %v379, 0.0
        %456 = vadd.xlane.f32.xlu0 %v455
        %v457 = vpop.xlane.xlu0 %456
        %v458 = vsel %vm260, %v380, 0.0
        %459 = vadd.xlane.f32.xlu0 %v458
        %v460 = vpop.xlane.xlu0 %459
        %v461 = vsel %vm260, %v381, 0.0
        %462 = vadd.xlane.f32.xlu0 %v461
        %v463 = vpop.xlane.xlu0 %462
        %v464 = vsel %vm260, %v382, 0.0
        %465 = vadd.xlane.f32.xlu0 %v464
        %v466 = vpop.xlane.xlu0 %465
        %v467 = vsel %vm260, %v383, 0.0
        %468 = vadd.xlane.f32.xlu0 %v467
        %v469 = vpop.xlane.xlu0 %468
        %v470 = vsel %vm260, %v384, 0.0
        %471 = vadd.xlane.f32.xlu0 %v470
        %v472 = vpop.xlane.xlu0 %471
        %v473 = vsel %vm260, %v385, 0.0
        %474 = vadd.xlane.f32.xlu0 %v473
        %v475 = vpop.xlane.xlu0 %474
        %v476 = vsel %vm260, %v386, 0.0
        %477 = vadd.xlane.f32.xlu0 %v476
        %v478 = vpop.xlane.xlu0 %477
        %v479 = vsel %vm260, %v387, 0.0
        %480 = vadd.xlane.f32.xlu0 %v479
        %v481 = vpop.xlane.xlu0 %480
        %v482 = vsel %vm260, %v388, 0.0
        %483 = vadd.xlane.f32.xlu0 %v482
        %v484 = vpop.xlane.xlu0 %483
        %v485 = vrcp.pop 32.0
        %v486 = vmul.f32 %v263, %v485
        %v487 = vmul.f32 %v266, %v485
        %v488 = vmul.f32 %v269, %v485
        %v489 = vmul.f32 %v272, %v485
        %v490 = vmul.f32 %v275, %v485
        %v491 = vmul.f32 %v278, %v485
        %v492 = vmul.f32 %v281, %v485
        %v493 = vmul.f32 %v284, %v485
        %v494 = vmul.f32 %v287, %v485
        %v495 = vmul.f32 %v290, %v485
        %v496 = vmul.f32 %v293, %v485
        %v497 = vmul.f32 %v296, %v485
        %v498 = vmul.f32 %v299, %v485
        %v499 = vmul.f32 %v302, %v485
        %v500 = vmul.f32 %v305, %v485
        %v501 = vmul.f32 %v308, %v485
        %v502 = vmul.f32 %v311, %v485
        %v503 = vmul.f32 %v314, %v485
        %v504 = vmul.f32 %v317, %v485
        %v505 = vmul.f32 %v320, %v485
        %v506 = vmul.f32 %v323, %v485
        %v507 = vmul.f32 %v326, %v485
        %v508 = vmul.f32 %v329, %v485
        %v509 = vmul.f32 %v332, %v485
        %v510 = vmul.f32 %v335, %v485
        %v511 = vmul.f32 %v338, %v485
        %v512 = vmul.f32 %v341, %v485
        %v513 = vmul.f32 %v344, %v485
        %v514 = vmul.f32 %v347, %v485
        %v515 = vmul.f32 %v350, %v485
        %v516 = vmul.f32 %v353, %v485
        %v517 = vmul.f32 %v356, %v485
        %v518 = vmul.f32 %v391, %v485
        %v519 = vmul.f32 %v394, %v485
        %v520 = vmul.f32 %v397, %v485
        %v521 = vmul.f32 %v400, %v485
        %v522 = vmul.f32 %v403, %v485
        %v523 = vmul.f32 %v406, %v485
        %v524 = vmul.f32 %v409, %v485
        %v525 = vmul.f32 %v412, %v485
        %v526 = vmul.f32 %v415, %v485
        %v527 = vmul.f32 %v418, %v485
        %v528 = vmul.f32 %v421, %v485
        %v529 = vmul.f32 %v424, %v485
        %v530 = vmul.f32 %v427, %v485
        %v531 = vmul.f32 %v430, %v485
        %v532 = vmul.f32 %v433, %v485
        %v533 = vmul.f32 %v436, %v485
        %v534 = vmul.f32 %v439, %v485
        %v535 = vmul.f32 %v442, %v485
        %v536 = vmul.f32 %v445, %v485
        %v537 = vmul.f32 %v448, %v485
        %v538 = vmul.f32 %v451, %v485
        %v539 = vmul.f32 %v454, %v485
        %v540 = vmul.f32 %v457, %v485
        %v541 = vmul.f32 %v460, %v485
        %v542 = vmul.f32 %v463, %v485
        %v543 = vmul.f32 %v466, %v485
        %v544 = vmul.f32 %v469, %v485
        %v545 = vmul.f32 %v472, %v485
        %v546 = vmul.f32 %v475, %v485
        %v547 = vmul.f32 %v478, %v485
        %v548 = vmul.f32 %v481, %v485
        %v549 = vmul.f32 %v484, %v485
        %v550 = vmul.f32 %v486, %v486
        %v551 = vmul.f32 %v487, %v487
        %v552 = vmul.f32 %v488, %v488
        %v553 = vmul.f32 %v489, %v489
        %v554 = vmul.f32 %v490, %v490
        %v555 = vmul.f32 %v491, %v491
        %v556 = vmul.f32 %v492, %v492
        %v557 = vmul.f32 %v493, %v493
        %v558 = vmul.f32 %v494, %v494
        %v559 = vmul.f32 %v495, %v495
        %v560 = vmul.f32 %v496, %v496
        %v561 = vmul.f32 %v497, %v497
        %v562 = vmul.f32 %v498, %v498
        %v563 = vmul.f32 %v499, %v499
        %v564 = vmul.f32 %v500, %v500
        %v565 = vmul.f32 %v501, %v501
        %v566 = vmul.f32 %v502, %v502
        %v567 = vmul.f32 %v503, %v503
        %v568 = vmul.f32 %v504, %v504
        %v569 = vmul.f32 %v505, %v505
        %v570 = vmul.f32 %v506, %v506
        %v571 = vmul.f32 %v507, %v507
        %v572 = vmul.f32 %v508, %v508
        %v573 = vmul.f32 %v509, %v509
        %v574 = vmul.f32 %v510, %v510
        %v575 = vmul.f32 %v511, %v511
        %v576 = vmul.f32 %v512, %v512
        %v577 = vmul.f32 %v513, %v513
        %v578 = vmul.f32 %v514, %v514
        %v579 = vmul.f32 %v515, %v515
        %v580 = vmul.f32 %v516, %v516
        %v581 = vmul.f32 %v517, %v517
        %v582 = vsub.f32 %v518, %v550
        %v583 = vsub.f32 %v519, %v551
        %v584 = vsub.f32 %v520, %v552
        %v585 = vsub.f32 %v521, %v553
        %v586 = vsub.f32 %v522, %v554
        %v587 = vsub.f32 %v523, %v555
        %v588 = vsub.f32 %v524, %v556
        %v589 = vsub.f32 %v525, %v557
        %v590 = vsub.f32 %v526, %v558
        %v591 = vsub.f32 %v527, %v559
        %v592 = vsub.f32 %v528, %v560
        %v593 = vsub.f32 %v529, %v561
        %v594 = vsub.f32 %v530, %v562
        %v595 = vsub.f32 %v531, %v563
        %v596 = vsub.f32 %v532, %v564
        %v597 = vsub.f32 %v533, %v565
        %v598 = vsub.f32 %v534, %v566
        %v599 = vsub.f32 %v535, %v567
        %v600 = vsub.f32 %v536, %v568
        %v601 = vsub.f32 %v537, %v569
        %v602 = vsub.f32 %v538, %v570
        %v603 = vsub.f32 %v539, %v571
        %v604 = vsub.f32 %v540, %v572
        %v605 = vsub.f32 %v541, %v573
        %v606 = vsub.f32 %v542, %v574
        %v607 = vsub.f32 %v543, %v575
        %v608 = vsub.f32 %v544, %v576
        %v609 = vsub.f32 %v545, %v577
        %v610 = vsub.f32 %v546, %v578
        %v611 = vsub.f32 %v547, %v579
        %v612 = vsub.f32 %v548, %v580
        %v613 = vsub.f32 %v549, %v581
        %v614 = vmax.f32 %v582, 0.0
        %v615 = vmax.f32 %v583, 0.0
        %v616 = vmax.f32 %v584, 0.0
        %v617 = vmax.f32 %v585, 0.0
        %v618 = vmax.f32 %v586, 0.0
        %v619 = vmax.f32 %v587, 0.0
        %v620 = vmax.f32 %v588, 0.0
        %v621 = vmax.f32 %v589, 0.0
        %v622 = vmax.f32 %v590, 0.0
        %v623 = vmax.f32 %v591, 0.0
        %v624 = vmax.f32 %v592, 0.0
        %v625 = vmax.f32 %v593, 0.0
        %v626 = vmax.f32 %v594, 0.0
        %v627 = vmax.f32 %v595, 0.0
        %v628 = vmax.f32 %v596, 0.0
        %v629 = vmax.f32 %v597, 0.0
        %v630 = vmax.f32 %v598, 0.0
        %v631 = vmax.f32 %v599, 0.0
        %v632 = vmax.f32 %v600, 0.0
        %v633 = vmax.f32 %v601, 0.0
        %v634 = vmax.f32 %v602, 0.0
        %v635 = vmax.f32 %v603, 0.0
        %v636 = vmax.f32 %v604, 0.0
        %v637 = vmax.f32 %v605, 0.0
        %v638 = vmax.f32 %v606, 0.0
        %v639 = vmax.f32 %v607, 0.0
        %v640 = vmax.f32 %v608, 0.0
        %v641 = vmax.f32 %v609, 0.0
        %v642 = vmax.f32 %v610, 0.0
        %v643 = vmax.f32 %v611, 0.0
        %v644 = vmax.f32 %v612, 0.0
        %v645 = vmax.f32 %v613, 0.0
        %v646 = vsub.f32 %v228, %v486
        %v647 = vsub.f32 %v229, %v487
        %v648 = vsub.f32 %v230, %v488
        %v649 = vsub.f32 %v231, %v489
        %v650 = vsub.f32 %v232, %v490
        %v651 = vsub.f32 %v233, %v491
        %v652 = vsub.f32 %v234, %v492
        %v653 = vsub.f32 %v235, %v493
        %v654 = vsub.f32 %v236, %v494
        %v655 = vsub.f32 %v237, %v495
        %v656 = vsub.f32 %v238, %v496
        %v657 = vsub.f32 %v239, %v497
        %v658 = vsub.f32 %v240, %v498
        %v659 = vsub.f32 %v241, %v499
        %v660 = vsub.f32 %v242, %v500
        %v661 = vsub.f32 %v243, %v501
        %v662 = vsub.f32 %v244, %v502
        %v663 = vsub.f32 %v245, %v503
        %v664 = vsub.f32 %v246, %v504
        %v665 = vsub.f32 %v247, %v505
        %v666 = vsub.f32 %v248, %v506
        %v667 = vsub.f32 %v249, %v507
        %v668 = vsub.f32 %v250, %v508
        %v669 = vsub.f32 %v251, %v509
        %v670 = vsub.f32 %v252, %v510
        %v671 = vsub.f32 %v253, %v511
        %v672 = vsub.f32 %v254, %v512
        %v673 = vsub.f32 %v255, %v513
        %v674 = vsub.f32 %v256, %v514
        %v675 = vsub.f32 %v257, %v515
        %v676 = vsub.f32 %v258, %v516
        %v677 = vsub.f32 %v259, %v517
        %v678 = vadd.f32 %v614, 1e-06
        %v679 = vadd.f32 %v615, 1e-06
        %v680 = vadd.f32 %v616, 1e-06
        %v681 = vadd.f32 %v617, 1e-06
        %v682 = vadd.f32 %v618, 1e-06
        %v683 = vadd.f32 %v619, 1e-06
        %v684 = vadd.f32 %v620, 1e-06
        %v685 = vadd.f32 %v621, 1e-06
        %v686 = vadd.f32 %v622, 1e-06
        %v687 = vadd.f32 %v623, 1e-06
        %v688 = vadd.f32 %v624, 1e-06
        %v689 = vadd.f32 %v625, 1e-06
        %v690 = vadd.f32 %v626, 1e-06
        %v691 = vadd.f32 %v627, 1e-06
        %v692 = vadd.f32 %v628, 1e-06
        %v693 = vadd.f32 %v629, 1e-06
        %v694 = vadd.f32 %v630, 1e-06
        %v695 = vadd.f32 %v631, 1e-06
        %v696 = vadd.f32 %v632, 1e-06
        %v697 = vadd.f32 %v633, 1e-06
        %v698 = vadd.f32 %v634, 1e-06
        %v699 = vadd.f32 %v635, 1e-06
        %v700 = vadd.f32 %v636, 1e-06
        %v701 = vadd.f32 %v637, 1e-06
        %v702 = vadd.f32 %v638, 1e-06
        %v703 = vadd.f32 %v639, 1e-06
        %v704 = vadd.f32 %v640, 1e-06
        %v705 = vadd.f32 %v641, 1e-06
        %v706 = vadd.f32 %v642, 1e-06
        %v707 = vadd.f32 %v643, 1e-06
        %v708 = vadd.f32 %v644, 1e-06
        %v709 = vadd.f32 %v645, 1e-06
        %v710 = vrsqrt.pop %v678
        %v711 = vrsqrt.pop %v679
        %v712 = vrsqrt.pop %v680
        %v713 = vrsqrt.pop %v681
        %v714 = vrsqrt.pop %v682
        %v715 = vrsqrt.pop %v683
        %v716 = vrsqrt.pop %v684
        %v717 = vrsqrt.pop %v685
        %v718 = vrsqrt.pop %v686
        %v719 = vrsqrt.pop %v687
        %v720 = vrsqrt.pop %v688
        %v721 = vrsqrt.pop %v689
        %v722 = vrsqrt.pop %v690
        %v723 = vrsqrt.pop %v691
        %v724 = vrsqrt.pop %v692
        %v725 = vrsqrt.pop %v693
        %v726 = vrsqrt.pop %v694
        %v727 = vrsqrt.pop %v695
        %v728 = vrsqrt.pop %v696
        %v729 = vrsqrt.pop %v697
        %v730 = vrsqrt.pop %v698
        %v731 = vrsqrt.pop %v699
        %v732 = vrsqrt.pop %v700
        %v733 = vrsqrt.pop %v701
        %v734 = vrsqrt.pop %v702
        %v735 = vrsqrt.pop %v703
        %v736 = vrsqrt.pop %v704
        %v737 = vrsqrt.pop %v705
        %v738 = vrsqrt.pop %v706
        %v739 = vrsqrt.pop %v707
        %v740 = vrsqrt.pop %v708
        %v741 = vrsqrt.pop %v709
        %v742 = vmul.f32 %v646, %v710
        %v743 = vmul.f32 %v647, %v711
        %v744 = vmul.f32 %v648, %v712
        %v745 = vmul.f32 %v649, %v713
        %v746 = vmul.f32 %v650, %v714
        %v747 = vmul.f32 %v651, %v715
        %v748 = vmul.f32 %v652, %v716
        %v749 = vmul.f32 %v653, %v717
        %v750 = vmul.f32 %v654, %v718
        %v751 = vmul.f32 %v655, %v719
        %v752 = vmul.f32 %v656, %v720
        %v753 = vmul.f32 %v657, %v721
        %v754 = vmul.f32 %v658, %v722
        %v755 = vmul.f32 %v659, %v723
        %v756 = vmul.f32 %v660, %v724
        %v757 = vmul.f32 %v661, %v725
        %v758 = vmul.f32 %v662, %v726
        %v759 = vmul.f32 %v663, %v727
        %v760 = vmul.f32 %v664, %v728
        %v761 = vmul.f32 %v665, %v729
        %v762 = vmul.f32 %v666, %v730
        %v763 = vmul.f32 %v667, %v731
        %v764 = vmul.f32 %v668, %v732
        %v765 = vmul.f32 %v669, %v733
        %v766 = vmul.f32 %v670, %v734
        %v767 = vmul.f32 %v671, %v735
        %v768 = vmul.f32 %v672, %v736
        %v769 = vmul.f32 %v673, %v737
        %v770 = vmul.f32 %v674, %v738
        %v771 = vmul.f32 %v675, %v739
        %v772 = vmul.f32 %v676, %v740
        %v773 = vmul.f32 %v677, %v741
        %v774 = vld [vmem:[%s1] sm:$0x1]
        %v776 = vlaneseq
        %v777 = vshrl.u32 %v776, 7
        %v778 = vsub.s32 0, %v777
        %v779 = vrot.slane %v774, %v778
        %v781 = vmul.f32 %v742, %v779
        %v782 = vmul.f32 %v743, %v779
        %v783 = vmul.f32 %v744, %v779
        %v784 = vmul.f32 %v745, %v779
        %v785 = vmul.f32 %v746, %v779
        %v786 = vmul.f32 %v747, %v779
        %v787 = vmul.f32 %v748, %v779
        %v788 = vmul.f32 %v749, %v779
        %v789 = vmul.f32 %v750, %v779
        %v790 = vmul.f32 %v751, %v779
        %v791 = vmul.f32 %v752, %v779
        %v792 = vmul.f32 %v753, %v779
        %v793 = vmul.f32 %v754, %v779
        %v794 = vmul.f32 %v755, %v779
        %v795 = vmul.f32 %v756, %v779
        %v796 = vmul.f32 %v757, %v779
        %v797 = vmul.f32 %v758, %v779
        %v798 = vmul.f32 %v759, %v779
        %v799 = vmul.f32 %v760, %v779
        %v800 = vmul.f32 %v761, %v779
        %v801 = vmul.f32 %v762, %v779
        %v802 = vmul.f32 %v763, %v779
        %v803 = vmul.f32 %v764, %v779
        %v804 = vmul.f32 %v765, %v779
        %v805 = vmul.f32 %v766, %v779
        %v806 = vmul.f32 %v767, %v779
        %v807 = vmul.f32 %v768, %v779
        %v808 = vmul.f32 %v769, %v779
        %v809 = vmul.f32 %v770, %v779
        %v810 = vmul.f32 %v771, %v779
        %v811 = vmul.f32 %v772, %v779
        %v812 = vmul.f32 %v773, %v779
        %v813 = vld [vmem:[%s2] sm:$0x1]
        %v815 = vlaneseq
        %v816 = vshrl.u32 %v815, 7
        %v817 = vsub.s32 0, %v816
        %v818 = vrot.slane %v813, %v817
        %v820 = vadd.f32 %v781, %v818
        %v821 = vadd.f32 %v782, %v818
        %v822 = vadd.f32 %v783, %v818
        %v823 = vadd.f32 %v784, %v818
        %v824 = vadd.f32 %v785, %v818
        %v825 = vadd.f32 %v786, %v818
        %v826 = vadd.f32 %v787, %v818
        %v827 = vadd.f32 %v788, %v818
        %v828 = vadd.f32 %v789, %v818
        %v829 = vadd.f32 %v790, %v818
        %v830 = vadd.f32 %v791, %v818
        %v831 = vadd.f32 %v792, %v818
        %v832 = vadd.f32 %v793, %v818
        %v833 = vadd.f32 %v794, %v818
        %v834 = vadd.f32 %v795, %v818
        %v835 = vadd.f32 %v796, %v818
        %v836 = vadd.f32 %v797, %v818
        %v837 = vadd.f32 %v798, %v818
        %v838 = vadd.f32 %v799, %v818
        %v839 = vadd.f32 %v800, %v818
        %v840 = vadd.f32 %v801, %v818
        %v841 = vadd.f32 %v802, %v818
        %v842 = vadd.f32 %v803, %v818
        %v843 = vadd.f32 %v804, %v818
        %v844 = vadd.f32 %v805, %v818
        %v845 = vadd.f32 %v806, %v818
        %v846 = vadd.f32 %v807, %v818
        %v847 = vadd.f32 %v808, %v818
        %v848 = vadd.f32 %v809, %v818
        %v849 = vadd.f32 %v810, %v818
        %v850 = vadd.f32 %v811, %v818
        %v851 = vadd.f32 %v812, %v818
        %v852 = vpack.c.bf16 %v821, %v820
        %v853 = vpack.c.bf16 %v823, %v822
        %v854 = vpack.c.bf16 %v825, %v824
        %v855 = vpack.c.bf16 %v827, %v826
        %v856 = vpack.c.bf16 %v829, %v828
        %v857 = vpack.c.bf16 %v831, %v830
        %v858 = vpack.c.bf16 %v833, %v832
        %v859 = vpack.c.bf16 %v835, %v834
        %v860 = vpack.c.bf16 %v837, %v836
        %v861 = vpack.c.bf16 %v839, %v838
        %v862 = vpack.c.bf16 %v841, %v840
        %v863 = vpack.c.bf16 %v843, %v842
        %v864 = vpack.c.bf16 %v845, %v844
        %v865 = vpack.c.bf16 %v847, %v846
        %v866 = vpack.c.bf16 %v849, %v848
        %v867 = vpack.c.bf16 %v851, %v850
        %v868 = vld [vmem:[%s3] sm:$0xf]
        %v869 = vld [vmem:[%s3 + $0x4] sm:$0xf]
        %v870 = vld [vmem:[%s3 + $0x8] sm:$0xf]
        %v871 = vld [vmem:[%s3 + $0xc] sm:$0xf]
        %v876 = vunpack.c.l.b16 %v868
        %v877 = vunpack.c.l.b16 %v869
        %v878 = vunpack.c.l.b16 %v870
        %v879 = vunpack.c.l.b16 %v871
        %v880 = vpack.c.b16 %v877, %v876
        %v881 = vpack.c.b16 %v879, %v878
        %v885 = vsel %vm260, %v852, 0
        %v888 = vsel %vm260, %v853, 0
        %v891 = vsel %vm260, %v854, 0
        %v894 = vsel %vm260, %v855, 0
        %v897 = vsel %vm260, %v856, 0
        %v900 = vsel %vm260, %v857, 0
        %v903 = vsel %vm260, %v858, 0
        %v906 = vsel %vm260, %v859, 0
        %v909 = vsel %vm260, %v860, 0
        %v912 = vsel %vm260, %v861, 0
        %v915 = vsel %vm260, %v862, 0
        %v918 = vsel %vm260, %v863, 0
        %v921 = vsel %vm260, %v864, 0
        %v924 = vsel %vm260, %v865, 0
        %v927 = vsel %vm260, %v866, 0
        %v930 = vsel %vm260, %v867, 0
        %932 = vmatprep.subr.bf16.mxu0 0
        %933 = vmatpush1.bf16.msra.mxu0 %v880
        %934 = vmatprep.subr.bf16.mxu0 0
        %935 = vmatpush1.bf16.msra.mxu0 %v881
        %936 = vmatprep.subr.bf16.mxu0 0
        %937 = vmatpush1.bf16.msra.mxu0 0
        %938 = vmatprep.subr.bf16.mxu0 0
        %939 = vmatpush1.bf16.msra.mxu0 0
        %940 = vmatprep.subr.bf16.mxu0 0
        %941 = vmatpush1.bf16.msra.mxu0 0
        %942 = vmatprep.subr.bf16.mxu0 0
        %943 = vmatpush1.bf16.msra.mxu0 0
        %944 = vmatprep.subr.bf16.mxu0 0
        %945 = vmatpush1.bf16.msra.mxu0 0
        %946 = vmatprep.subr.bf16.mxu0 0
        %947 = vmatpush1.bf16.msra.mxu0 0
        %948 = vmatprep.subr.bf16.mxu0 0
        %949 = vmatpush1.bf16.msra.mxu0 0
        %950 = vmatprep.subr.bf16.mxu0 0
        %951 = vmatpush1.bf16.msra.mxu0 0
        %952 = vmatprep.subr.bf16.mxu0 0
        %953 = vmatpush1.bf16.msra.mxu0 0
        %954 = vmatprep.subr.bf16.mxu0 0
        %955 = vmatpush1.bf16.msra.mxu0 0
        %956 = vmatprep.subr.bf16.mxu0 0
        %957 = vmatpush1.bf16.msra.mxu0 0
        %958 = vmatprep.subr.bf16.mxu0 0
        %959 = vmatpush1.bf16.msra.mxu0 0
        %960 = vmatprep.subr.bf16.mxu0 0
        %961 = vmatpush1.bf16.msra.mxu0 0
        %962 = vmatprep.subr.bf16.mxu0 0
        %963 = vmatpush1.bf16.msra.mxu0 0
        %964 = vmatprep.mubr.bf16.mxu0 0
        %965 = vmatmul.mubr.bf16.gmra.mrb[0].mxu0 %v885
        %v966 = vpop.f32.mrb[0].mxu0
        %v967 = vadd.f32 0.0, %v966
        %v968 = vpop.f32.mrb[0].mxu0
        %v969 = vpop.f32.mrb[0].mxu0
        %v970 = vadd.f32 0.0, %v969
        %v971 = vpop.f32.mrb[0].mxu0
        %972 = vmatprep.mubr.bf16.mxu0 0
        %973 = vmatmul.mubr.bf16.gmra.mrb[0].mxu0 %v888
        %v974 = vpop.f32.mrb[0].mxu0
        %v975 = vadd.f32 0.0, %v974
        %v976 = vpop.f32.mrb[0].mxu0
        %v977 = vpop.f32.mrb[0].mxu0
        %v978 = vadd.f32 0.0, %v977
        %v979 = vpop.f32.mrb[0].mxu0
        %980 = vmatprep.mubr.bf16.mxu0 0
        %981 = vmatmul.mubr.bf16.gmra.mrb[0].mxu0 %v891
        %v982 = vpop.f32.mrb[0].mxu0
        %v983 = vadd.f32 0.0, %v982
        %v984 = vpop.f32.mrb[0].mxu0
        %v985 = vpop.f32.mrb[0].mxu0
        %v986 = vadd.f32 0.0, %v985
        %v987 = vpop.f32.mrb[0].mxu0
        %988 = vmatprep.mubr.bf16.mxu0 0
        %989 = vmatmul.mubr.bf16.gmra.mrb[0].mxu0 %v894
        %v990 = vpop.f32.mrb[0].mxu0
        %v991 = vadd.f32 0.0, %v990
        %v992 = vpop.f32.mrb[0].mxu0
        %v993 = vpop.f32.mrb[0].mxu0
        %v994 = vadd.f32 0.0, %v993
        %v995 = vpop.f32.mrb[0].mxu0
        %996 = vmatprep.mubr.bf16.mxu0 0
        %997 = vmatmul.mubr.bf16.gmra.mrb[0].mxu0 %v897
        %v998 = vpop.f32.mrb[0].mxu0
        %v999 = vadd.f32 0.0, %v998
        %v1000 = vpop.f32.mrb[0].mxu0
        %v1001 = vpop.f32.mrb[0].mxu0
        %v1002 = vadd.f32 0.0, %v1001
        %v1003 = vpop.f32.mrb[0].mxu0
        %1004 = vmatprep.mubr.bf16.mxu0 0
        %1005 = vmatmul.mubr.bf16.gmra.mrb[0].mxu0 %v900
        %v1006 = vpop.f32.mrb[0].mxu0
        %v1007 = vadd.f32 0.0, %v1006
        %v1008 = vpop.f32.mrb[0].mxu0
        %v1009 = vpop.f32.mrb[0].mxu0
        %v1010 = vadd.f32 0.0, %v1009
        %v1011 = vpop.f32.mrb[0].mxu0
        %1012 = vmatprep.mubr.bf16.mxu0 0
        %1013 = vmatmul.mubr.bf16.gmra.mrb[0].mxu0 %v903
        %v1014 = vpop.f32.mrb[0].mxu0
        %v1015 = vadd.f32 0.0, %v1014
        %v1016 = vpop.f32.mrb[0].mxu0
        %v1017 = vpop.f32.mrb[0].mxu0
        %v1018 = vadd.f32 0.0, %v1017
        %v1019 = vpop.f32.mrb[0].mxu0
        %1020 = vmatprep.mubr.bf16.mxu0 0
        %1021 = vmatmul.mubr.bf16.gmra.mrb[0].mxu0 %v906
        %v1022 = vpop.f32.mrb[0].mxu0
        %v1023 = vadd.f32 0.0, %v1022
        %v1024 = vpop.f32.mrb[0].mxu0
        %v1025 = vpop.f32.mrb[0].mxu0
        %v1026 = vadd.f32 0.0, %v1025
        %v1027 = vpop.f32.mrb[0].mxu0
        %1028 = vmatprep.mubr.bf16.mxu0 0
        %1029 = vmatmul.mubr.bf16.gmra.mrb[0].mxu0 %v909
        %v1030 = vpop.f32.mrb[0].mxu0
        %v1031 = vadd.f32 0.0, %v1030
        %v1032 = vpop.f32.mrb[0].mxu0
        %v1033 = vpop.f32.mrb[0].mxu0
        %v1034 = vadd.f32 0.0, %v1033
        %v1035 = vpop.f32.mrb[0].mxu0
        %1036 = vmatprep.mubr.bf16.mxu0 0
        %1037 = vmatmul.mubr.bf16.gmra.mrb[0].mxu0 %v912
        %v1038 = vpop.f32.mrb[0].mxu0
        %v1039 = vadd.f32 0.0, %v1038
        %v1040 = vpop.f32.mrb[0].mxu0
        %v1041 = vpop.f32.mrb[0].mxu0
        %v1042 = vadd.f32 0.0, %v1041
        %v1043 = vpop.f32.mrb[0].mxu0
        %1044 = vmatprep.mubr.bf16.mxu0 0
        %1045 = vmatmul.mubr.bf16.gmra.mrb[0].mxu0 %v915
        %v1046 = vpop.f32.mrb[0].mxu0
        %v1047 = vadd.f32 0.0, %v1046
        %v1048 = vpop.f32.mrb[0].mxu0
        %v1049 = vpop.f32.mrb[0].mxu0
        %v1050 = vadd.f32 0.0, %v1049
        %v1051 = vpop.f32.mrb[0].mxu0
        %1052 = vmatprep.mubr.bf16.mxu0 0
        %1053 = vmatmul.mubr.bf16.gmra.mrb[0].mxu0 %v918
        %v1054 = vpop.f32.mrb[0].mxu0
        %v1055 = vadd.f32 0.0, %v1054
        %v1056 = vpop.f32.mrb[0].mxu0
        %v1057 = vpop.f32.mrb[0].mxu0
        %v1058 = vadd.f32 0.0, %v1057
        %v1059 = vpop.f32.mrb[0].mxu0
        %1060 = vmatprep.mubr.bf16.mxu0 0
        %1061 = vmatmul.mubr.bf16.gmra.mrb[0].mxu0 %v921
        %v1062 = vpop.f32.mrb[0].mxu0
        %v1063 = vadd.f32 0.0, %v1062
        %v1064 = vpop.f32.mrb[0].mxu0
        %v1065 = vpop.f32.mrb[0].mxu0
        %v1066 = vadd.f32 0.0, %v1065
        %v1067 = vpop.f32.mrb[0].mxu0
        %1068 = vmatprep.mubr.bf16.mxu0 0
        %1069 = vmatmul.mubr.bf16.gmra.mrb[0].mxu0 %v924
        %v1070 = vpop.f32.mrb[0].mxu0
        %v1071 = vadd.f32 0.0, %v1070
        %v1072 = vpop.f32.mrb[0].mxu0
        %v1073 = vpop.f32.mrb[0].mxu0
        %v1074 = vadd.f32 0.0, %v1073
        %v1075 = vpop.f32.mrb[0].mxu0
        %1076 = vmatprep.mubr.bf16.mxu0 0
        %1077 = vmatmul.mubr.bf16.gmra.mrb[0].mxu0 %v927
        %v1078 = vpop.f32.mrb[0].mxu0
        %v1079 = vadd.f32 0.0, %v1078
        %v1080 = vpop.f32.mrb[0].mxu0
        %v1081 = vpop.f32.mrb[0].mxu0
        %v1082 = vadd.f32 0.0, %v1081
        %v1083 = vpop.f32.mrb[0].mxu0
        %1084 = vmatprep.mubr.bf16.mxu0 0
        %1085 = vmatmul.mubr.bf16.gmra.mrb[0].mxu0 %v930
        %v1086 = vpop.f32.mrb[0].mxu0
        %v1087 = vadd.f32 0.0, %v1086
        %v1088 = vpop.f32.mrb[0].mxu0
        %v1089 = vpop.f32.mrb[0].mxu0
        %v1090 = vadd.f32 0.0, %v1089
        %v1091 = vpop.f32.mrb[0].mxu0
        %1092 = vdwg.mxu0
        %v1093 = vpack.c.bf16 %v970, %v967
        %v1094 = vpack.c.bf16 %v978, %v975
        %v1095 = vpack.c.bf16 %v986, %v983
        %v1096 = vpack.c.bf16 %v994, %v991
        %v1097 = vpack.c.bf16 %v1002, %v999
        %v1098 = vpack.c.bf16 %v1010, %v1007
        %v1099 = vpack.c.bf16 %v1018, %v1015
        %v1100 = vpack.c.bf16 %v1026, %v1023
        %v1101 = vpack.c.bf16 %v1034, %v1031
        %v1102 = vpack.c.bf16 %v1042, %v1039
        %v1103 = vpack.c.bf16 %v1050, %v1047
        %v1104 = vpack.c.bf16 %v1058, %v1055
        %v1105 = vpack.c.bf16 %v1066, %v1063
        %v1106 = vpack.c.bf16 %v1074, %v1071
        %v1107 = vpack.c.bf16 %v1082, %v1079
        %v1108 = vpack.c.bf16 %v1090, %v1087
        %v1125 = vunpack.c.l.b16 %v1093
        %v1126 = vunpack.c.h.b16 %v1093
        %v1127 = vunpack.c.l.b16 %v1094
        %v1128 = vunpack.c.h.b16 %v1094
        %v1129 = vunpack.c.l.b16 %v1095
        %v1130 = vunpack.c.h.b16 %v1095
        %v1131 = vunpack.c.l.b16 %v1096
        %v1132 = vunpack.c.h.b16 %v1096
        %v1133 = vunpack.c.l.b16 %v1097
        %v1134 = vunpack.c.h.b16 %v1097
        %v1135 = vunpack.c.l.b16 %v1098
        %v1136 = vunpack.c.h.b16 %v1098
        %v1137 = vunpack.c.l.b16 %v1099
        %v1138 = vunpack.c.h.b16 %v1099
        %v1139 = vunpack.c.l.b16 %v1100
        %v1140 = vunpack.c.h.b16 %v1100
        %v1141 = vunpack.c.l.b16 %v1101
        %v1142 = vunpack.c.h.b16 %v1101
        %v1143 = vunpack.c.l.b16 %v1102
        %v1144 = vunpack.c.h.b16 %v1102
        %v1145 = vunpack.c.l.b16 %v1103
        %v1146 = vunpack.c.h.b16 %v1103
        %v1147 = vunpack.c.l.b16 %v1104
        %v1148 = vunpack.c.h.b16 %v1104
        %v1149 = vunpack.c.l.b16 %v1105
        %v1150 = vunpack.c.h.b16 %v1105
        %v1151 = vunpack.c.l.b16 %v1106
        %v1152 = vunpack.c.h.b16 %v1106
        %v1153 = vunpack.c.l.b16 %v1107
        %v1154 = vunpack.c.h.b16 %v1107
        %v1155 = vunpack.c.l.b16 %v1108
        %v1156 = vunpack.c.h.b16 %v1108
        %v1157 = vpack.c.b16 %v1125, %v1125
        %v1158 = vpack.c.b16 %v1126, %v1126
        %v1159 = vpack.c.b16 %v1127, %v1127
        %v1160 = vpack.c.b16 %v1128, %v1128
        %v1161 = vpack.c.b16 %v1129, %v1129
        %v1162 = vpack.c.b16 %v1130, %v1130
        %v1163 = vpack.c.b16 %v1131, %v1131
        %v1164 = vpack.c.b16 %v1132, %v1132
        %v1165 = vpack.c.b16 %v1133, %v1133
        %v1166 = vpack.c.b16 %v1134, %v1134
        %v1167 = vpack.c.b16 %v1135, %v1135
        %v1168 = vpack.c.b16 %v1136, %v1136
        %v1169 = vpack.c.b16 %v1137, %v1137
        %v1170 = vpack.c.b16 %v1138, %v1138
        %v1171 = vpack.c.b16 %v1139, %v1139
        %v1172 = vpack.c.b16 %v1140, %v1140
        %v1173 = vpack.c.b16 %v1141, %v1141
        %v1174 = vpack.c.b16 %v1142, %v1142
        %v1175 = vpack.c.b16 %v1143, %v1143
        %v1176 = vpack.c.b16 %v1144, %v1144
        %v1177 = vpack.c.b16 %v1145, %v1145
        %v1178 = vpack.c.b16 %v1146, %v1146
        %v1179 = vpack.c.b16 %v1147, %v1147
        %v1180 = vpack.c.b16 %v1148, %v1148
        %v1181 = vpack.c.b16 %v1149, %v1149
        %v1182 = vpack.c.b16 %v1150, %v1150
        %v1183 = vpack.c.b16 %v1151, %v1151
        %v1184 = vpack.c.b16 %v1152, %v1152
        %v1185 = vpack.c.b16 %v1153, %v1153
        %v1186 = vpack.c.b16 %v1154, %v1154
        %v1187 = vpack.c.b16 %v1155, %v1155
        %v1188 = vpack.c.b16 %v1156, %v1156
        %1221 = vst [vmem:[%s215] sm:$0xf] %v1157
        %1222 = vst [vmem:[%s215 + $0x4] sm:$0xf] %v1158
        %1223 = vst [vmem:[%s215 + $0x8] sm:$0xf] %v1159
        %1224 = vst [vmem:[%s215 + $0xc] sm:$0xf] %v1160
        %1225 = vst [vmem:[%s215 + $0x10] sm:$0xf] %v1161
        %1226 = vst [vmem:[%s215 + $0x14] sm:$0xf] %v1162
        %1227 = vst [vmem:[%s215 + $0x18] sm:$0xf] %v1163
        %1228 = vst [vmem:[%s215 + $0x1c] sm:$0xf] %v1164
        %1229 = vst [vmem:[%s215 + $0x20] sm:$0xf] %v1165
        %1230 = vst [vmem:[%s215 + $0x24] sm:$0xf] %v1166
        %1231 = vst [vmem:[%s215 + $0x28] sm:$0xf] %v1167
        %1232 = vst [vmem:[%s215 + $0x2c] sm:$0xf] %v1168
        %1233 = vst [vmem:[%s215 + $0x30] sm:$0xf] %v1169
        %1234 = vst [vmem:[%s215 + $0x34] sm:$0xf] %v1170
        %1235 = vst [vmem:[%s215 + $0x38] sm:$0xf] %v1171
        %1236 = vst [vmem:[%s215 + $0x3c] sm:$0xf] %v1172
        %1237 = vst [vmem:[%s215 + $0x40] sm:$0xf] %v1173
        %1238 = vst [vmem:[%s215 + $0x44] sm:$0xf] %v1174
        %1239 = vst [vmem:[%s215 + $0x48] sm:$0xf] %v1175
        %1240 = vst [vmem:[%s215 + $0x4c] sm:$0xf] %v1176
        %1241 = vst [vmem:[%s215 + $0x50] sm:$0xf] %v1177
        %1242 = vst [vmem:[%s215 + $0x54] sm:$0xf] %v1178
        %1243 = vst [vmem:[%s215 + $0x58] sm:$0xf] %v1179
        %1244 = vst [vmem:[%s215 + $0x5c] sm:$0xf] %v1180
        %1245 = vst [vmem:[%s215 + $0x60] sm:$0xf] %v1181
        %1246 = vst [vmem:[%s215 + $0x64] sm:$0xf] %v1182
        %1247 = vst [vmem:[%s215 + $0x68] sm:$0xf] %v1183
        %1248 = vst [vmem:[%s215 + $0x6c] sm:$0xf] %v1184
        %1249 = vst [vmem:[%s215 + $0x70] sm:$0xf] %v1185
        %1250 = vst [vmem:[%s215 + $0x74] sm:$0xf] %v1186
        %1251 = vst [vmem:[%s215 + $0x78] sm:$0xf] %v1187
        %1252 = vst [vmem:[%s215 + $0x7c] sm:$0xf] %v1188
        %s1253 = sand.u32 %s131, 1
        %s1254 = scalar_lea.sflag [#allocation3], %s1253
        %s1255 = sand.u32 %s131, 1
        %s1256 = smul.addr %s1255, 128
        %s1257 = scalar_lea.vmem [#allocation2], %s1256
        // Predicated region
        $region37: #{tpu_custom_call.1} parent=35 // pred_check
          %p1258 = pneg %p141
        $region38: #{tpu_custom_call.1} parent=35 // pred_check_branch
          %1260 = sbr.rel (%p1258) target = $region40
        $region39: #{tpu_custom_call.1} parent=35 // pred_region
          %s1261 = smul.u32 32, %s23
          %s1263 = ssub.s32 2048, 2048
          %1264 = vsyncadd %s1254, %s1263
          %s1265 = smul.addr %s22, 32
          %s1266 = sadd.s32 %s1261, %s1265
          %s1267 = smul.addr %s1266, 64
          %s1268 = scalar_lea.hbm %s4, %s1267
          %s1269 = sshll.u32 %s1257, 4
          %s1270 = int_to_ptr.vmem [resolvable:$true] %s1269
          %1275 = dma.vmem_to_hbm [thread:$0]  %s1270, 2048, %s1268, %s1254, 64, 64, 4
        $region40: #{tpu_custom_call.1} parent=35 // pred_fallthru
          _
      $region36: #{tpu_custom_call.1} parent=5 // pred_fallthru
        _
      %p1276 = scmp.le.s32.totalorder 2, %s13
      // Predicated region
      $region41: #{tpu_custom_call.1} parent=5 // pred_check
        %p1277 = pneg %p1276
      $region42: #{tpu_custom_call.1} parent=5 // pred_check_branch
        %1279 = sbr.rel (%p1277) target = $region44
      $region43: #{tpu_custom_call.1} parent=5 // pred_region
        %s1280 = ssub.s32 %s13, 2
        // Predicated region
        $region45: #{tpu_custom_call.1} parent=43 // pred_check
          %p1281 = pneg %p147
        $region46: #{tpu_custom_call.1} parent=43 // pred_check_branch
          %1283 = sbr.rel (%p1281) target = $region48
        $region47: #{tpu_custom_call.1} parent=43 // pred_region
          %s1284 = sand.u32 %s132, 1
          %s1285 = scalar_lea.sflag [#allocation3], %s1284
          %s1286 = sand.u32 %s132, 1
          %s1287 = smul.addr %s1286, 128
          %s1288 = scalar_lea.vmem [#allocation2], %s1287
          %1289 = dma.done %s1285, 2048
        $region48: #{tpu_custom_call.1} parent=43 // pred_fallthru
          _
      $region44: #{tpu_custom_call.1} parent=5 // pred_fallthru
        _
    $region6: #{tpu_custom_call.1} parent=1 // loop_footer
      %s17 = sadd.s32 1, %s13
    $region7: #{tpu_custom_call.1} parent=1 // loop_footer_branch
      %12 = sbr.rel target = $region3
    $region8: #{tpu_custom_call.1} parent=1 // loop_exit
      _
    %1290 = vsyncpa [#allocation3], 1
    %s1291 = scalar_lea.sflag [#allocation3], 1
    %1292 = vsyncpa %s1291, 1

</llo_original>
